<compile_context>
chip_gen: v6e
topology: v6e:2x2x1
jax: 0.10.0
libtpu: 0.0.40
codegen_flags: <defaults>
</compile_context>

<pallas_src>
import jax
import jax.numpy as jnp
from jax.experimental import pallas as pl
from jax.experimental.pallas import tpu as pltpu

IN_FEATURES = 9      # flattened 3x3 board
HIDDEN = 128
OUT_FEATURES = 9
MAX_TB = 1024        # cap on batch rows per grid step


def _mlp_kernel(x_ref, w1_ref, b1_ref, w2_ref, b2_ref, o_ref):
    # Fused fc1 -> bias -> ReLU -> fc2 -> bias on one batch tile, all in VMEM.
    # x is (TB, 9); the K=9 and N=9 contractions run as single (masked) MXU
    # passes, accumulation in f32 via preferred_element_type.
    x = x_ref[...]                                                    # (TB, 9)
    h = jnp.dot(x, w1_ref[...], preferred_element_type=jnp.float32)  # (TB, 128)
    h = jnp.maximum(h + b1_ref[...], 0.0)                            # bias + ReLU
    y = jnp.dot(h, w2_ref[...], preferred_element_type=jnp.float32)  # (TB, 9)
    o_ref[...] = (y + b2_ref[...]).astype(o_ref.dtype)


@jax.jit
def tictactoe_net_forward(x, w1_t, b1, w2_t, b2):
    """Forward pass matching PyTorch TicTacToeNet.

    x: (B, 9) f32 board states; w1_t: (9, 128); b1: (1, 128);
    w2_t: (128, 9); b2: (1, 9). Weights are in (in, out) layout, i.e. the
    transpose of PyTorch's nn.Linear .weight.
    """
    B = x.shape[0]
    # Adaptive batch tile: one grid step for small B, up to 1024-row tiles for
    # large B (partial last tile is handled by Pallas masking).
    TB = min(((B + 7) // 8) * 8, MAX_TB)
    grid = (pl.cdiv(B, TB),)

    cost = pl.CostEstimate(
        flops=2 * B * (IN_FEATURES * HIDDEN + HIDDEN * OUT_FEATURES),
        transcendentals=0,
        bytes_accessed=4 * (B * IN_FEATURES + B * OUT_FEATURES
                            + IN_FEATURES * HIDDEN + HIDDEN
                            + HIDDEN * OUT_FEATURES + OUT_FEATURES),
    )

    return pl.pallas_call(
        _mlp_kernel,
        out_shape=jax.ShapeDtypeStruct((B, OUT_FEATURES), jnp.float32),
        grid=grid,
        in_specs=[
            # Batch-blocked input, unpadded: last dim == full array dim (9).
            pl.BlockSpec((TB, IN_FEATURES), lambda i: (i, 0)),
            # Weights/biases pinned in VMEM across the grid; single-buffered
            # since their index_map is constant.
            pl.BlockSpec((IN_FEATURES, HIDDEN), lambda i: (0, 0),
                         pipeline_mode=pl.Buffered(1)),
            pl.BlockSpec((1, HIDDEN), lambda i: (0, 0),
                         pipeline_mode=pl.Buffered(1)),
            pl.BlockSpec((HIDDEN, OUT_FEATURES), lambda i: (0, 0),
                         pipeline_mode=pl.Buffered(1)),
            pl.BlockSpec((1, OUT_FEATURES), lambda i: (0, 0),
                         pipeline_mode=pl.Buffered(1)),
        ],
        # Direct (B, 9) output: tiny masked stores beat a padded HBM round-trip.
        out_specs=pl.BlockSpec((TB, OUT_FEATURES), lambda i: (i, 0)),
        compiler_params=pltpu.CompilerParams(
            # Independent batch tiles: lets Mosaic shard across both TCs on v7x.
            dimension_semantics=("parallel",),
        ),
        cost_estimate=cost,
    )(x, w1_t, b1, w2_t, b2)


def init_params(key):
    """Init mirroring PyTorch nn.Linear default: U(-1/sqrt(fan_in), +1/sqrt(fan_in))."""
    k1, k2, k3, k4 = jax.random.split(key, 4)
    bound1 = 1.0 / jnp.sqrt(float(IN_FEATURES))
    bound2 = 1.0 / jnp.sqrt(float(HIDDEN))
    # Stored in (in, out) layout = transpose of PyTorch's (out, in) weight.
    w1_t = jax.random.uniform(k1, (IN_FEATURES, HIDDEN), jnp.float32, -bound1, bound1)
    b1 = jax.random.uniform(k2, (1, HIDDEN), jnp.float32, -bound1, bound1)
    w2_t = jax.random.uniform(k3, (HIDDEN, OUT_FEATURES), jnp.float32, -bound2, bound2)
    b2 = jax.random.uniform(k4, (1, OUT_FEATURES), jnp.float32, -bound2, bound2)
    return w1_t, b1, w2_t, b2


if __name__ == "__main__":
    key = jax.random.PRNGKey(0)
    kx, kp = jax.random.split(key)

    # Small but non-trivial batch of board states (not a multiple of 8 or 128,
    # so the ragged-lane / rounded-tile paths are exercised).
    B = 200
    # Board states in {-1, 0, 1}, flattened 3x3 -> 9, as float (matches module input).
    x = jax.random.randint(kx, (B, IN_FEATURES), -1, 2).astype(jnp.float32)

    w1_t, b1, w2_t, b2 = init_params(kp)

    out = tictactoe_net_forward(x, w1_t, b1, w2_t, b2)
    out = jax.block_until_ready(out)

    # Reference check in plain JAX (same math as the PyTorch forward).
    ref = jnp.maximum(x @ w1_t + b1, 0.0) @ w2_t + b2
    assert out.shape == (B, OUT_FEATURES)
    assert jnp.allclose(out, ref, atol=1e-5, rtol=1e-5)

    print("KERNEL_OK")
</pallas_src>

<mosaic_0001>
module attributes {stable_mosaic.version = 11 : i64} {
  func.func @_mlp_kernel(%arg0: i32, %arg1: memref<200x9xf32, #tpu.memory_space<vmem>>, %arg2: memref<9x128xf32, #tpu.memory_space<vmem>>, %arg3: memref<1x128xf32, #tpu.memory_space<vmem>>, %arg4: memref<128x9xf32, #tpu.memory_space<vmem>>, %arg5: memref<1x9xf32, #tpu.memory_space<vmem>>, %arg6: memref<200x9xf32, #tpu.memory_space<vmem>>) attributes {dimension_semantics = [#tpu.dimension_semantics<parallel>], iteration_bounds = array<i64: 1>, scalar_prefetch = 0 : i64, scratch_operands = 0 : i64, tpu.core_type = #tpu.core_type<tc>, window_params = [{transform_indices = @transform_0, window_bounds = array<i64: 200, 9>}, {pipeline_mode = #tpu.pipeline_mode<synchronous>, transform_indices = @transform_1, window_bounds = array<i64: 9, 128>}, {pipeline_mode = #tpu.pipeline_mode<synchronous>, transform_indices = @transform_2, window_bounds = array<i64: 1, 128>}, {pipeline_mode = #tpu.pipeline_mode<synchronous>, transform_indices = @transform_3, window_bounds = array<i64: 128, 9>}, {pipeline_mode = #tpu.pipeline_mode<synchronous>, transform_indices = @transform_4, window_bounds = array<i64: 1, 9>}, {transform_indices = @transform_5, window_bounds = array<i64: 200, 9>}]} {
    %c0 = arith.constant 0 : index
    %c0_0 = arith.constant 0 : index
    %0 = vector.load %arg1[%c0, %c0_0] : memref<200x9xf32, #tpu.memory_space<vmem>>, vector<200x9xf32>
    %c0_1 = arith.constant 0 : index
    %c0_2 = arith.constant 0 : index
    %1 = vector.load %arg2[%c0_1, %c0_2] : memref<9x128xf32, #tpu.memory_space<vmem>>, vector<9x128xf32>
    %cst = arith.constant dense<0.000000e+00> : vector<200x128xf32>
    %2 = tpu.matmul %0, %1, %cst {dimension_numbers = #tpu.dot_dimension_numbers<[1], [0], [0], [1], [0, 0, 1, 1], [], []>} : vector<200x9xf32>, vector<9x128xf32>, vector<200x128xf32> -> vector<200x128xf32>
    %c0_3 = arith.constant 0 : index
    %c0_4 = arith.constant 0 : index
    %3 = vector.load %arg3[%c0_3, %c0_4] : memref<1x128xf32, #tpu.memory_space<vmem>>, vector<1x128xf32>
    %4 = vector.broadcast %3 : vector<1x128xf32> to vector<200x128xf32>
    %5 = arith.addf %2, %4 : vector<200x128xf32>
    %cst_5 = arith.constant 0.000000e+00 : f32
    %6 = vector.broadcast %cst_5 : f32 to vector<200x128xf32>
    %7 = arith.maximumf %5, %6 : vector<200x128xf32>
    %c0_6 = arith.constant 0 : index
    %c0_7 = arith.constant 0 : index
    %8 = vector.load %arg4[%c0_6, %c0_7] : memref<128x9xf32, #tpu.memory_space<vmem>>, vector<128x9xf32>
    %cst_8 = arith.constant dense<0.000000e+00> : vector<200x9xf32>
    %9 = tpu.matmul %7, %8, %cst_8 {dimension_numbers = #tpu.dot_dimension_numbers<[1], [0], [0], [1], [0, 0, 1, 1], [], []>} : vector<200x128xf32>, vector<128x9xf32>, vector<200x9xf32> -> vector<200x9xf32>
    %c0_9 = arith.constant 0 : index
    %c0_10 = arith.constant 0 : index
    %10 = vector.load %arg5[%c0_9, %c0_10] : memref<1x9xf32, #tpu.memory_space<vmem>>, vector<1x9xf32>
    %11 = vector.broadcast %10 : vector<1x9xf32> to vector<200x9xf32>
    %12 = arith.addf %9, %11 : vector<200x9xf32>
    %c0_11 = arith.constant 0 : index
    %c0_12 = arith.constant 0 : index
    %13 = vector.load %arg6[%c0_11, %c0_12] : memref<200x9xf32, #tpu.memory_space<vmem>>, vector<200x9xf32>
    tpu.vector_store %arg6[%c0_11, %c0_12], %12 {strides = array<i32>} : memref<200x9xf32, #tpu.memory_space<vmem>>, vector<200x9xf32>,
    return
  }
  func.func @transform_0(%arg0: i32) -> (i32, i32) {
    %c0_i32 = arith.constant 0 : i32
    %c0_i32_0 = arith.constant 0 : i32
    return %arg0, %c0_i32 : i32, i32
  }
  func.func @transform_1(%arg0: i32) -> (i32, i32) {
    %c0_i32 = arith.constant 0 : i32
    %c0_i32_0 = arith.constant 0 : i32
    %c0_i32_1 = arith.constant 0 : i32
    return %c0_i32, %c0_i32_0 : i32, i32
  }
  func.func @transform_2(%arg0: i32) -> (i32, i32) {
    %c0_i32 = arith.constant 0 : i32
    %c0_i32_0 = arith.constant 0 : i32
    %c0_i32_1 = arith.constant 0 : i32
    return %c0_i32, %c0_i32_0 : i32, i32
  }
  func.func @transform_3(%arg0: i32) -> (i32, i32) {
    %c0_i32 = arith.constant 0 : i32
    %c0_i32_0 = arith.constant 0 : i32
    %c0_i32_1 = arith.constant 0 : i32
    return %c0_i32, %c0_i32_0 : i32, i32
  }
  func.func @transform_4(%arg0: i32) -> (i32, i32) {
    %c0_i32 = arith.constant 0 : i32
    %c0_i32_0 = arith.constant 0 : i32
    %c0_i32_1 = arith.constant 0 : i32
    return %c0_i32, %c0_i32_0 : i32, i32
  }
  func.func @transform_5(%arg0: i32) -> (i32, i32) {
    %c0_i32 = arith.constant 0 : i32
    %c0_i32_0 = arith.constant 0 : i32
    return %arg0, %c0_i32 : i32, i32
  }
}

</mosaic_0001>

<llo_original>
// kernel: tictactoe_net_forward.1
$region0: #{tictactoe_net_forward.1}
  #allocation0 [shape = 'u32[]', space=smem, size = 0x4, offset = 0x4, fixed_abs, tag = 'smem constant byte address 0x4 - core index']
  #allocation1 [shape = 'u32[144,128]{1,0:T(1,128)}', space=vmem, size = 0x12000, scoped, tag = 'internal scratch']
  %s0 = inlined_call_operand.vmem [shape: f32[200,9], index: 0, kind: input, shape index: {}]
  %s1 = inlined_call_operand.vmem [shape: f32[9,128], index: 1, kind: input, shape index: {}]
  %s2 = inlined_call_operand.vmem [shape: f32[1,128], index: 2, kind: input, shape index: {}]
  %s3 = inlined_call_operand.vmem [shape: f32[128,9], index: 3, kind: input, shape index: {}]
  %s4 = inlined_call_operand.vmem [shape: f32[1,9], index: 4, kind: input, shape index: {}]
  %s5 = inlined_call_operand.vmem [shape: f32[200,9], index: 5, kind: output, shape index: {}]
  %s6 = sld [smem:[#allocation0]]
  $region30: #{tictactoe_net_forward.1} parent=0
    _
  %s8 = ssub.s32 1, %s6
  %s9 = scalar_select 0, %s8, %s6
  // Predicated region
  $region2: #{tictactoe_net_forward.1} parent=0 // pred_check
    _
  $region3: #{tictactoe_net_forward.1} parent=0 // pred_check_branch
    %11 = sbr.rel (0) target = $region5
  $region4: #{tictactoe_net_forward.1} parent=0 // pred_region
    _
  $region5: #{tictactoe_net_forward.1} parent=0 // pred_fallthru
    _
  // Predicated region
  $region6: #{tictactoe_net_forward.1} parent=0 // pred_check
    _
  $region7: #{tictactoe_net_forward.1} parent=0 // pred_check_branch
    %13 = sbr.rel (0) target = $region9
  $region8: #{tictactoe_net_forward.1} parent=0 // pred_region
    _
  $region9: #{tictactoe_net_forward.1} parent=0 // pred_fallthru
    _
  // Predicated region
  $region10: #{tictactoe_net_forward.1} parent=0 // pred_check
    _
  $region11: #{tictactoe_net_forward.1} parent=0 // pred_check_branch
    %15 = sbr.rel (0) target = $region13
  $region12: #{tictactoe_net_forward.1} parent=0 // pred_region
    _
  $region13: #{tictactoe_net_forward.1} parent=0 // pred_fallthru
    _
  // Predicated region
  $region14: #{tictactoe_net_forward.1} parent=0 // pred_check
    _
  $region15: #{tictactoe_net_forward.1} parent=0 // pred_check_branch
    %17 = sbr.rel (0) target = $region17
  $region16: #{tictactoe_net_forward.1} parent=0 // pred_region
    _
  $region17: #{tictactoe_net_forward.1} parent=0 // pred_fallthru
    _
  // Predicated region
  $region18: #{tictactoe_net_forward.1} parent=0 // pred_check
    _
  $region19: #{tictactoe_net_forward.1} parent=0 // pred_check_branch
    %19 = sbr.rel (0) target = $region21
  $region20: #{tictactoe_net_forward.1} parent=0 // pred_region
    _
  $region21: #{tictactoe_net_forward.1} parent=0 // pred_fallthru
    _
  %v20 = vld [vmem:[%s0] sm:$0xff]
  %v21 = vld [vmem:[%s0 + $0x8] sm:$0xff]
  %v22 = vld [vmem:[%s0 + $0x10] sm:$0xff]
  %v23 = vld [vmem:[%s0 + $0x18] sm:$0xff]
  %v24 = vld [vmem:[%s0 + $0x20] sm:$0xff]
  %v25 = vld [vmem:[%s0 + $0x28] sm:$0xff]
  %v26 = vld [vmem:[%s0 + $0x30] sm:$0xff]
  %v27 = vld [vmem:[%s0 + $0x38] sm:$0xff]
  %v28 = vld [vmem:[%s0 + $0x40] sm:$0xff]
  %v29 = vld [vmem:[%s0 + $0x48] sm:$0xff]
  %v30 = vld [vmem:[%s0 + $0x50] sm:$0xff]
  %v31 = vld [vmem:[%s0 + $0x58] sm:$0xff]
  %v32 = vld [vmem:[%s0 + $0x60] sm:$0xff]
  %v33 = vld [vmem:[%s0 + $0x68] sm:$0xff]
  %v34 = vld [vmem:[%s0 + $0x70] sm:$0xff]
  %v35 = vld [vmem:[%s0 + $0x78] sm:$0xff]
  %v36 = vld [vmem:[%s0 + $0x80] sm:$0xff]
  %v37 = vld [vmem:[%s0 + $0x88] sm:$0xff]
  %v38 = vld [vmem:[%s0 + $0x90] sm:$0xff]
  %v39 = vld [vmem:[%s0 + $0x98] sm:$0xff]
  %v40 = vld [vmem:[%s0 + $0xa0] sm:$0xff]
  %v41 = vld [vmem:[%s0 + $0xa8] sm:$0xff]
  %v42 = vld [vmem:[%s0 + $0xb0] sm:$0xff]
  %v43 = vld [vmem:[%s0 + $0xb8] sm:$0xff]
  %v44 = vld [vmem:[%s0 + $0xc0] sm:$0xff]
  %v45 = vld [vmem:[%s1] sm:$0xff]
  %v46 = vld [vmem:[%s1 + $0x8] sm:$0x1]
  %v47 = vld [vmem:[%s2] sm:$0x1]
  %v49 = vlaneseq
  %v50 = vshrl.u32 %v49, 7
  %v51 = vsub.s32 0, %v50
  %v52 = vrot.slane %v47, %v51
  %vm54 = vcmask 72704
  %v56 = vsel %vm54, %v20, 0
  %v59 = vsel %vm54, %v21, 0
  %v62 = vsel %vm54, %v22, 0
  %v65 = vsel %vm54, %v23, 0
  %v68 = vsel %vm54, %v24, 0
  %v71 = vsel %vm54, %v25, 0
  %v74 = vsel %vm54, %v26, 0
  %v77 = vsel %vm54, %v27, 0
  %v80 = vsel %vm54, %v28, 0
  %v83 = vsel %vm54, %v29, 0
  %v86 = vsel %vm54, %v30, 0
  %v89 = vsel %vm54, %v31, 0
  %v92 = vsel %vm54, %v32, 0
  %v95 = vsel %vm54, %v33, 0
  %v98 = vsel %vm54, %v34, 0
  %v101 = vsel %vm54, %v35, 0
  %v104 = vsel %vm54, %v36, 0
  %v107 = vsel %vm54, %v37, 0
  %v110 = vsel %vm54, %v38, 0
  %v113 = vsel %vm54, %v39, 0
  %v116 = vsel %vm54, %v40, 0
  %v119 = vsel %vm54, %v41, 0
  %v122 = vsel %vm54, %v42, 0
  %v125 = vsel %vm54, %v43, 0
  %v128 = vsel %vm54, %v44, 0
  %vm130 = vcmask 1040384
  %v132 = vsel %vm130, %v46, 0
  %134 = vmatprep.subr.mxu0 0.0
  %135 = vmatpush1.msra.mxu0 0.0
  %136 = vmatprep.subr.mxu0 0.0
  %137 = vmatpush1.msra.mxu0 0.0
  %138 = vmatprep.subr.mxu0 0.0
  %139 = vmatpush1.msra.mxu0 0.0
  %140 = vmatprep.subr.mxu0 0.0
  %141 = vmatpush1.msra.mxu0 0.0
  %142 = vmatprep.subr.mxu0 0.0
  %143 = vmatpush1.msra.mxu0 0.0
  %144 = vmatprep.subr.mxu0 0.0
  %145 = vmatpush1.msra.mxu0 0.0
  %146 = vmatprep.subr.mxu0 0.0
  %147 = vmatpush1.msra.mxu0 0.0
  %148 = vmatprep.subr.mxu0 0.0
  %149 = vmatpush1.msra.mxu0 0.0
  %150 = vmatprep.subr.mxu0 0.0
  %151 = vmatpush1.msra.mxu0 0.0
  %152 = vmatprep.subr.mxu0 0.0
  %153 = vmatpush1.msra.mxu0 0.0
  %154 = vmatprep.subr.mxu0 0.0
  %155 = vmatpush1.msra.mxu0 0.0
  %156 = vmatprep.subr.mxu0 0.0
  %157 = vmatpush1.msra.mxu0 0.0
  %158 = vmatprep.subr.mxu0 0.0
  %159 = vmatpush1.msra.mxu0 0.0
  %160 = vmatprep.subr.mxu0 0.0
  %161 = vmatpush1.msra.mxu0 0.0
  %162 = vmatprep.subr.mxu0 0.0
  %163 = vmatpush1.msra.mxu0 %v132
  %164 = vmatprep.subr.mxu0 0.0
  %165 = vmatpush1.msra.mxu0 %v45
  %166 = vmatprep.subr.mxu0 0.0
  %167 = vmatpush2.msra.mxu0 0.0
  %168 = vmatprep.subr.mxu0 0.0
  %169 = vmatpush2.msra.mxu0 0.0
  %170 = vmatprep.subr.mxu0 0.0
  %171 = vmatpush2.msra.mxu0 0.0
  %172 = vmatprep.subr.mxu0 0.0
  %173 = vmatpush2.msra.mxu0 0.0
  %174 = vmatprep.subr.mxu0 0.0
  %175 = vmatpush2.msra.mxu0 0.0
  %176 = vmatprep.subr.mxu0 0.0
  %177 = vmatpush2.msra.mxu0 0.0
  %178 = vmatprep.subr.mxu0 0.0
  %179 = vmatpush2.msra.mxu0 0.0
  %180 = vmatprep.subr.mxu0 0.0
  %181 = vmatpush2.msra.mxu0 0.0
  %182 = vmatprep.subr.mxu0 0.0
  %183 = vmatpush2.msra.mxu0 0.0
  %184 = vmatprep.subr.mxu0 0.0
  %185 = vmatpush2.msra.mxu0 0.0
  %186 = vmatprep.subr.mxu0 0.0
  %187 = vmatpush2.msra.mxu0 0.0
  %188 = vmatprep.subr.mxu0 0.0
  %189 = vmatpush2.msra.mxu0 0.0
  %190 = vmatprep.subr.mxu0 0.0
  %191 = vmatpush2.msra.mxu0 0.0
  %192 = vmatprep.subr.mxu0 0.0
  %193 = vmatpush2.msra.mxu0 0.0
  %194 = vmatprep.subr.mxu0 0.0
  %195 = vmatpush2.msra.mxu0 0.0
  %196 = vmatprep.subr.mxu0 0.0
  %197 = vmatpush2.msra.mxu0 0.0
  %198 = vmatprep.mubr.f32.mxu0 0.0
  %199 = vmatmul.mubr.f32.gmra.mxu0 %v56
  %v200 = vpop.f32.mrf.mxu0
  %v201 = vadd.f32 %v52, %v200
  %v202 = vpop.f32.mrf.mxu0
  %203 = vmatprep.mubr.f32.mxu0 0.0
  %204 = vmatmul.mubr.f32.gmra.mxu0 %v59
  %v205 = vpop.f32.mrf.mxu0
  %v206 = vadd.f32 %v52, %v205
  %v207 = vpop.f32.mrf.mxu0
  %208 = vmatprep.mubr.f32.mxu0 0.0
  %209 = vmatmul.mubr.f32.gmra.mxu0 %v62
  %v210 = vpop.f32.mrf.mxu0
  %v211 = vadd.f32 %v52, %v210
  %v212 = vpop.f32.mrf.mxu0
  %213 = vmatprep.mubr.f32.mxu0 0.0
  %214 = vmatmul.mubr.f32.gmra.mxu0 %v65
  %v215 = vpop.f32.mrf.mxu0
  %v216 = vadd.f32 %v52, %v215
  %v217 = vpop.f32.mrf.mxu0
  %218 = vmatprep.mubr.f32.mxu0 0.0
  %219 = vmatmul.mubr.f32.gmra.mxu0 %v68
  %v220 = vpop.f32.mrf.mxu0
  %v221 = vadd.f32 %v52, %v220
  %v222 = vpop.f32.mrf.mxu0
  %223 = vmatprep.mubr.f32.mxu0 0.0
  %224 = vmatmul.mubr.f32.gmra.mxu0 %v71
  %v225 = vpop.f32.mrf.mxu0
  %v226 = vadd.f32 %v52, %v225
  %v227 = vpop.f32.mrf.mxu0
  %228 = vmatprep.mubr.f32.mxu0 0.0
  %229 = vmatmul.mubr.f32.gmra.mxu0 %v74
  %v230 = vpop.f32.mrf.mxu0
  %v231 = vadd.f32 %v52, %v230
  %v232 = vpop.f32.mrf.mxu0
  %233 = vmatprep.mubr.f32.mxu0 0.0
  %234 = vmatmul.mubr.f32.gmra.mxu0 %v77
  %v235 = vpop.f32.mrf.mxu0
  %v236 = vadd.f32 %v52, %v235
  %v237 = vpop.f32.mrf.mxu0
  %238 = vmatprep.mubr.f32.mxu0 0.0
  %239 = vmatmul.mubr.f32.gmra.mxu0 %v80
  %v240 = vpop.f32.mrf.mxu0
  %v241 = vadd.f32 %v52, %v240
  %v242 = vpop.f32.mrf.mxu0
  %243 = vmatprep.mubr.f32.mxu0 0.0
  %244 = vmatmul.mubr.f32.gmra.mxu0 %v83
  %v245 = vpop.f32.mrf.mxu0
  %v246 = vadd.f32 %v52, %v245
  %v247 = vpop.f32.mrf.mxu0
  %248 = vmatprep.mubr.f32.mxu0 0.0
  %249 = vmatmul.mubr.f32.gmra.mxu0 %v86
  %v250 = vpop.f32.mrf.mxu0
  %v251 = vadd.f32 %v52, %v250
  %v252 = vpop.f32.mrf.mxu0
  %253 = vmatprep.mubr.f32.mxu0 0.0
  %254 = vmatmul.mubr.f32.gmra.mxu0 %v89
  %v255 = vpop.f32.mrf.mxu0
  %v256 = vadd.f32 %v52, %v255
  %v257 = vpop.f32.mrf.mxu0
  %258 = vmatprep.mubr.f32.mxu0 0.0
  %259 = vmatmul.mubr.f32.gmra.mxu0 %v92
  %v260 = vpop.f32.mrf.mxu0
  %v261 = vadd.f32 %v52, %v260
  %v262 = vpop.f32.mrf.mxu0
  %263 = vmatprep.mubr.f32.mxu0 0.0
  %264 = vmatmul.mubr.f32.gmra.mxu0 %v95
  %v265 = vpop.f32.mrf.mxu0
  %v266 = vadd.f32 %v52, %v265
  %v267 = vpop.f32.mrf.mxu0
  %268 = vmatprep.mubr.f32.mxu0 0.0
  %269 = vmatmul.mubr.f32.gmra.mxu0 %v98
  %v270 = vpop.f32.mrf.mxu0
  %v271 = vadd.f32 %v52, %v270
  %v272 = vpop.f32.mrf.mxu0
  %273 = vmatprep.mubr.f32.mxu0 0.0
  %274 = vmatmul.mubr.f32.gmra.mxu0 %v101
  %v275 = vpop.f32.mrf.mxu0
  %v276 = vadd.f32 %v52, %v275
  %v277 = vpop.f32.mrf.mxu0
  %278 = vmatprep.mubr.f32.mxu0 0.0
  %279 = vmatmul.mubr.f32.gmra.mxu0 %v104
  %v280 = vpop.f32.mrf.mxu0
  %v281 = vadd.f32 %v52, %v280
  %v282 = vpop.f32.mrf.mxu0
  %283 = vmatprep.mubr.f32.mxu0 0.0
  %284 = vmatmul.mubr.f32.gmra.mxu0 %v107
  %v285 = vpop.f32.mrf.mxu0
  %v286 = vadd.f32 %v52, %v285
  %v287 = vpop.f32.mrf.mxu0
  %288 = vmatprep.mubr.f32.mxu0 0.0
  %289 = vmatmul.mubr.f32.gmra.mxu0 %v110
  %v290 = vpop.f32.mrf.mxu0
  %v291 = vadd.f32 %v52, %v290
  %v292 = vpop.f32.mrf.mxu0
  %293 = vmatprep.mubr.f32.mxu0 0.0
  %294 = vmatmul.mubr.f32.gmra.mxu0 %v113
  %v295 = vpop.f32.mrf.mxu0
  %v296 = vadd.f32 %v52, %v295
  %v297 = vpop.f32.mrf.mxu0
  %298 = vmatprep.mubr.f32.mxu0 0.0
  %299 = vmatmul.mubr.f32.gmra.mxu0 %v116
  %v300 = vpop.f32.mrf.mxu0
  %v301 = vadd.f32 %v52, %v300
  %v302 = vpop.f32.mrf.mxu0
  %303 = vmatprep.mubr.f32.mxu0 0.0
  %304 = vmatmul.mubr.f32.gmra.mxu0 %v119
  %v305 = vpop.f32.mrf.mxu0
  %v306 = vadd.f32 %v52, %v305
  %v307 = vpop.f32.mrf.mxu0
  %308 = vmatprep.mubr.f32.mxu0 0.0
  %309 = vmatmul.mubr.f32.gmra.mxu0 %v122
  %v310 = vpop.f32.mrf.mxu0
  %v311 = vadd.f32 %v52, %v310
  %v312 = vpop.f32.mrf.mxu0
  %313 = vmatprep.mubr.f32.mxu0 0.0
  %314 = vmatmul.mubr.f32.gmra.mxu0 %v125
  %v315 = vpop.f32.mrf.mxu0
  %v316 = vadd.f32 %v52, %v315
  %v317 = vpop.f32.mrf.mxu0
  %318 = vmatprep.mubr.f32.mxu0 0.0
  %319 = vmatmul.mubr.f32.gmra.mxu0 %v128
  %v320 = vpop.f32.mrf.mxu0
  %v321 = vadd.f32 %v52, %v320
  %v322 = vpop.f32.mrf.mxu0
  %323 = vdwg.mxu0
  %v324 = vmax.f32 %v201, 0.0
  %v325 = vmax.f32 %v206, 0.0
  %v326 = vmax.f32 %v211, 0.0
  %v327 = vmax.f32 %v216, 0.0
  %v328 = vmax.f32 %v221, 0.0
  %v329 = vmax.f32 %v226, 0.0
  %v330 = vmax.f32 %v231, 0.0
  %v331 = vmax.f32 %v236, 0.0
  %v332 = vmax.f32 %v241, 0.0
  %v333 = vmax.f32 %v246, 0.0
  %v334 = vmax.f32 %v251, 0.0
  %v335 = vmax.f32 %v256, 0.0
  %v336 = vmax.f32 %v261, 0.0
  %v337 = vmax.f32 %v266, 0.0
  %v338 = vmax.f32 %v271, 0.0
  %v339 = vmax.f32 %v276, 0.0
  %v340 = vmax.f32 %v281, 0.0
  %v341 = vmax.f32 %v286, 0.0
  %v342 = vmax.f32 %v291, 0.0
  %v343 = vmax.f32 %v296, 0.0
  %v344 = vmax.f32 %v301, 0.0
  %v345 = vmax.f32 %v306, 0.0
  %v346 = vmax.f32 %v311, 0.0
  %v347 = vmax.f32 %v316, 0.0
  %v348 = vmax.f32 %v321, 0.0
  %v349 = vld [vmem:[%s3] sm:$0xff]
  %v350 = vld [vmem:[%s3 + $0x8] sm:$0xff]
  %v351 = vld [vmem:[%s3 + $0x10] sm:$0xff]
  %v352 = vld [vmem:[%s3 + $0x18] sm:$0xff]
  %v353 = vld [vmem:[%s3 + $0x20] sm:$0xff]
  %v354 = vld [vmem:[%s3 + $0x28] sm:$0xff]
  %v355 = vld [vmem:[%s3 + $0x30] sm:$0xff]
  %v356 = vld [vmem:[%s3 + $0x38] sm:$0xff]
  %v357 = vld [vmem:[%s3 + $0x40] sm:$0xff]
  %v358 = vld [vmem:[%s3 + $0x48] sm:$0xff]
  %v359 = vld [vmem:[%s3 + $0x50] sm:$0xff]
  %v360 = vld [vmem:[%s3 + $0x58] sm:$0xff]
  %v361 = vld [vmem:[%s3 + $0x60] sm:$0xff]
  %v362 = vld [vmem:[%s3 + $0x68] sm:$0xff]
  %v363 = vld [vmem:[%s3 + $0x70] sm:$0xff]
  %v364 = vld [vmem:[%s3 + $0x78] sm:$0xff]
  %v365 = vld [vmem:[%s4] sm:$0x1]
  %v367 = vlaneseq
  %v368 = vshrl.u32 %v367, 7
  %v369 = vsub.s32 0, %v368
  %v370 = vrot.slane %v365, %v369
  %372 = vmatprep.subr.mxu0 0.0
  %373 = vmatpush1.msra.mxu0 %v364
  %374 = vmatprep.subr.mxu0 0.0
  %375 = vmatpush1.msra.mxu0 %v363
  %376 = vmatprep.subr.mxu0 0.0
  %377 = vmatpush1.msra.mxu0 %v362
  %378 = vmatprep.subr.mxu0 0.0
  %379 = vmatpush1.msra.mxu0 %v361
  %380 = vmatprep.subr.mxu0 0.0
  %381 = vmatpush1.msra.mxu0 %v360
  %382 = vmatprep.subr.mxu0 0.0
  %383 = vmatpush1.msra.mxu0 %v359
  %384 = vmatprep.subr.mxu0 0.0
  %385 = vmatpush1.msra.mxu0 %v358
  %386 = vmatprep.subr.mxu0 0.0
  %387 = vmatpush1.msra.mxu0 %v357
  %388 = vmatprep.subr.mxu0 0.0
  %389 = vmatpush1.msra.mxu0 %v356
  %390 = vmatprep.subr.mxu0 0.0
  %391 = vmatpush1.msra.mxu0 %v355
  %392 = vmatprep.subr.mxu0 0.0
  %393 = vmatpush1.msra.mxu0 %v354
  %394 = vmatprep.subr.mxu0 0.0
  %395 = vmatpush1.msra.mxu0 %v353
  %396 = vmatprep.subr.mxu0 0.0
  %397 = vmatpush1.msra.mxu0 %v352
  %398 = vmatprep.subr.mxu0 0.0
  %399 = vmatpush1.msra.mxu0 %v351
  %400 = vmatprep.subr.mxu0 0.0
  %401 = vmatpush1.msra.mxu0 %v350
  %402 = vmatprep.subr.mxu0 0.0
  %403 = vmatpush1.msra.mxu0 %v349
  %404 = vmatprep.subr.mxu0 0.0
  %405 = vmatpush2.msra.mxu0 0.0
  %406 = vmatprep.subr.mxu0 0.0
  %407 = vmatpush2.msra.mxu0 0.0
  %408 = vmatprep.subr.mxu0 0.0
  %409 = vmatpush2.msra.mxu0 0.0
  %410 = vmatprep.subr.mxu0 0.0
  %411 = vmatpush2.msra.mxu0 0.0
  %412 = vmatprep.subr.mxu0 0.0
  %413 = vmatpush2.msra.mxu0 0.0
  %414 = vmatprep.subr.mxu0 0.0
  %415 = vmatpush2.msra.mxu0 0.0
  %416 = vmatprep.subr.mxu0 0.0
  %417 = vmatpush2.msra.mxu0 0.0
  %418 = vmatprep.subr.mxu0 0.0
  %419 = vmatpush2.msra.mxu0 0.0
  %420 = vmatprep.subr.mxu0 0.0
  %421 = vmatpush2.msra.mxu0 0.0
  %422 = vmatprep.subr.mxu0 0.0
  %423 = vmatpush2.msra.mxu0 0.0
  %424 = vmatprep.subr.mxu0 0.0
  %425 = vmatpush2.msra.mxu0 0.0
  %426 = vmatprep.subr.mxu0 0.0
  %427 = vmatpush2.msra.mxu0 0.0
  %428 = vmatprep.subr.mxu0 0.0
  %429 = vmatpush2.msra.mxu0 0.0
  %430 = vmatprep.subr.mxu0 0.0
  %431 = vmatpush2.msra.mxu0 0.0
  %432 = vmatprep.subr.mxu0 0.0
  %433 = vmatpush2.msra.mxu0 0.0
  %434 = vmatprep.subr.mxu0 0.0
  %435 = vmatpush2.msra.mxu0 0.0
  %436 = vmatprep.mubr.f32.mxu0 0.0
  %437 = vmatmul.mubr.f32.gmra.mxu0 %v324
  %v438 = vpop.f32.mrf.mxu0
  %v439 = vadd.f32 %v370, %v438
  %v440 = vpop.f32.mrf.mxu0
  %441 = vmatprep.mubr.f32.mxu0 0.0
  %442 = vmatmul.mubr.f32.gmra.mxu0 %v325
  %v443 = vpop.f32.mrf.mxu0
  %v444 = vadd.f32 %v370, %v443
  %v445 = vpop.f32.mrf.mxu0
  %446 = vmatprep.mubr.f32.mxu0 0.0
  %447 = vmatmul.mubr.f32.gmra.mxu0 %v326
  %v448 = vpop.f32.mrf.mxu0
  %v449 = vadd.f32 %v370, %v448
  %v450 = vpop.f32.mrf.mxu0
  %451 = vmatprep.mubr.f32.mxu0 0.0
  %452 = vmatmul.mubr.f32.gmra.mxu0 %v327
  %v453 = vpop.f32.mrf.mxu0
  %v454 = vadd.f32 %v370, %v453
  %v455 = vpop.f32.mrf.mxu0
  %456 = vmatprep.mubr.f32.mxu0 0.0
  %457 = vmatmul.mubr.f32.gmra.mxu0 %v328
  %v458 = vpop.f32.mrf.mxu0
  %v459 = vadd.f32 %v370, %v458
  %v460 = vpop.f32.mrf.mxu0
  %461 = vmatprep.mubr.f32.mxu0 0.0
  %462 = vmatmul.mubr.f32.gmra.mxu0 %v329
  %v463 = vpop.f32.mrf.mxu0
  %v464 = vadd.f32 %v370, %v463
  %v465 = vpop.f32.mrf.mxu0
  %466 = vmatprep.mubr.f32.mxu0 0.0
  %467 = vmatmul.mubr.f32.gmra.mxu0 %v330
  %v468 = vpop.f32.mrf.mxu0
  %v469 = vadd.f32 %v370, %v468
  %v470 = vpop.f32.mrf.mxu0
  %471 = vmatprep.mubr.f32.mxu0 0.0
  %472 = vmatmul.mubr.f32.gmra.mxu0 %v331
  %v473 = vpop.f32.mrf.mxu0
  %v474 = vadd.f32 %v370, %v473
  %v475 = vpop.f32.mrf.mxu0
  %476 = vmatprep.mubr.f32.mxu0 0.0
  %477 = vmatmul.mubr.f32.gmra.mxu0 %v332
  %v478 = vpop.f32.mrf.mxu0
  %v479 = vadd.f32 %v370, %v478
  %v480 = vpop.f32.mrf.mxu0
  %481 = vmatprep.mubr.f32.mxu0 0.0
  %482 = vmatmul.mubr.f32.gmra.mxu0 %v333
  %v483 = vpop.f32.mrf.mxu0
  %v484 = vadd.f32 %v370, %v483
  %v485 = vpop.f32.mrf.mxu0
  %486 = vmatprep.mubr.f32.mxu0 0.0
  %487 = vmatmul.mubr.f32.gmra.mxu0 %v334
  %v488 = vpop.f32.mrf.mxu0
  %v489 = vadd.f32 %v370, %v488
  %v490 = vpop.f32.mrf.mxu0
  %491 = vmatprep.mubr.f32.mxu0 0.0
  %492 = vmatmul.mubr.f32.gmra.mxu0 %v335
  %v493 = vpop.f32.mrf.mxu0
  %v494 = vadd.f32 %v370, %v493
  %v495 = vpop.f32.mrf.mxu0
  %496 = vmatprep.mubr.f32.mxu0 0.0
  %497 = vmatmul.mubr.f32.gmra.mxu0 %v336
  %v498 = vpop.f32.mrf.mxu0
  %v499 = vadd.f32 %v370, %v498
  %v500 = vpop.f32.mrf.mxu0
  %501 = vmatprep.mubr.f32.mxu0 0.0
  %502 = vmatmul.mubr.f32.gmra.mxu0 %v337
  %v503 = vpop.f32.mrf.mxu0
  %v504 = vadd.f32 %v370, %v503
  %v505 = vpop.f32.mrf.mxu0
  %506 = vmatprep.mubr.f32.mxu0 0.0
  %507 = vmatmul.mubr.f32.gmra.mxu0 %v338
  %v508 = vpop.f32.mrf.mxu0
  %v509 = vadd.f32 %v370, %v508
  %v510 = vpop.f32.mrf.mxu0
  %511 = vmatprep.mubr.f32.mxu0 0.0
  %512 = vmatmul.mubr.f32.gmra.mxu0 %v339
  %v513 = vpop.f32.mrf.mxu0
  %v514 = vadd.f32 %v370, %v513
  %v515 = vpop.f32.mrf.mxu0
  %516 = vmatprep.mubr.f32.mxu0 0.0
  %517 = vmatmul.mubr.f32.gmra.mxu0 %v340
  %v518 = vpop.f32.mrf.mxu0
  %v519 = vadd.f32 %v370, %v518
  %v520 = vpop.f32.mrf.mxu0
  %521 = vmatprep.mubr.f32.mxu0 0.0
  %522 = vmatmul.mubr.f32.gmra.mxu0 %v341
  %v523 = vpop.f32.mrf.mxu0
  %v524 = vadd.f32 %v370, %v523
  %v525 = vpop.f32.mrf.mxu0
  %526 = vmatprep.mubr.f32.mxu0 0.0
  %527 = vmatmul.mubr.f32.gmra.mxu0 %v342
  %v528 = vpop.f32.mrf.mxu0
  %v529 = vadd.f32 %v370, %v528
  %v530 = vpop.f32.mrf.mxu0
  %531 = vmatprep.mubr.f32.mxu0 0.0
  %532 = vmatmul.mubr.f32.gmra.mxu0 %v343
  %v533 = vpop.f32.mrf.mxu0
  %v534 = vadd.f32 %v370, %v533
  %v535 = vpop.f32.mrf.mxu0
  %536 = vmatprep.mubr.f32.mxu0 0.0
  %537 = vmatmul.mubr.f32.gmra.mxu0 %v344
  %v538 = vpop.f32.mrf.mxu0
  %v539 = vadd.f32 %v370, %v538
  %v540 = vpop.f32.mrf.mxu0
  %541 = vmatprep.mubr.f32.mxu0 0.0
  %542 = vmatmul.mubr.f32.gmra.mxu0 %v345
  %v543 = vpop.f32.mrf.mxu0
  %v544 = vadd.f32 %v370, %v543
  %v545 = vpop.f32.mrf.mxu0
  %546 = vmatprep.mubr.f32.mxu0 0.0
  %547 = vmatmul.mubr.f32.gmra.mxu0 %v346
  %v548 = vpop.f32.mrf.mxu0
  %v549 = vadd.f32 %v370, %v548
  %v550 = vpop.f32.mrf.mxu0
  %551 = vmatprep.mubr.f32.mxu0 0.0
  %552 = vmatmul.mubr.f32.gmra.mxu0 %v347
  %v553 = vpop.f32.mrf.mxu0
  %v554 = vadd.f32 %v370, %v553
  %v555 = vpop.f32.mrf.mxu0
  %556 = vmatprep.mubr.f32.mxu0 0.0
  %557 = vmatmul.mubr.f32.gmra.mxu0 %v348
  %v558 = vpop.f32.mrf.mxu0
  %v559 = vadd.f32 %v370, %v558
  %v560 = vpop.f32.mrf.mxu0
  %561 = vdwg.mxu0
  %562 = vst.msk [vmem:[%s5] sm:$0xff] %vm54, %v439
  %563 = vst.msk [vmem:[%s5 + $0x8] sm:$0xff] %vm54, %v444
  %564 = vst.msk [vmem:[%s5 + $0x10] sm:$0xff] %vm54, %v449
  %565 = vst.msk [vmem:[%s5 + $0x18] sm:$0xff] %vm54, %v454
  %566 = vst.msk [vmem:[%s5 + $0x20] sm:$0xff] %vm54, %v459
  %567 = vst.msk [vmem:[%s5 + $0x28] sm:$0xff] %vm54, %v464
  %568 = vst.msk [vmem:[%s5 + $0x30] sm:$0xff] %vm54, %v469
  %569 = vst.msk [vmem:[%s5 + $0x38] sm:$0xff] %vm54, %v474
  %570 = vst.msk [vmem:[%s5 + $0x40] sm:$0xff] %vm54, %v479
  %571 = vst.msk [vmem:[%s5 + $0x48] sm:$0xff] %vm54, %v484
  %572 = vst.msk [vmem:[%s5 + $0x50] sm:$0xff] %vm54, %v489
  %573 = vst.msk [vmem:[%s5 + $0x58] sm:$0xff] %vm54, %v494
  %574 = vst.msk [vmem:[%s5 + $0x60] sm:$0xff] %vm54, %v499
  %575 = vst.msk [vmem:[%s5 + $0x68] sm:$0xff] %vm54, %v504
  %576 = vst.msk [vmem:[%s5 + $0x70] sm:$0xff] %vm54, %v509
  %577 = vst.msk [vmem:[%s5 + $0x78] sm:$0xff] %vm54, %v514
  %578 = vst.msk [vmem:[%s5 + $0x80] sm:$0xff] %vm54, %v519
  %579 = vst.msk [vmem:[%s5 + $0x88] sm:$0xff] %vm54, %v524
  %580 = vst.msk [vmem:[%s5 + $0x90] sm:$0xff] %vm54, %v529
  %581 = vst.msk [vmem:[%s5 + $0x98] sm:$0xff] %vm54, %v534
  %582 = vst.msk [vmem:[%s5 + $0xa0] sm:$0xff] %vm54, %v539
  %583 = vst.msk [vmem:[%s5 + $0xa8] sm:$0xff] %vm54, %v544
  %584 = vst.msk [vmem:[%s5 + $0xb0] sm:$0xff] %vm54, %v549
  %585 = vst.msk [vmem:[%s5 + $0xb8] sm:$0xff] %vm54, %v554
  %586 = vst.msk [vmem:[%s5 + $0xc0] sm:$0xff] %vm54, %v559
  // Predicated region
  $region22: #{tictactoe_net_forward.1} parent=0 // pred_check
    _
  $region23: #{tictactoe_net_forward.1} parent=0 // pred_check_branch
    %588 = sbr.rel (0) target = $region25
  $region24: #{tictactoe_net_forward.1} parent=0 // pred_region
    _
  $region25: #{tictactoe_net_forward.1} parent=0 // pred_fallthru
    _
  // Predicated region
  $region26: #{tictactoe_net_forward.1} parent=0 // pred_check
    _
  $region27: #{tictactoe_net_forward.1} parent=0 // pred_check_branch
    %590 = sbr.rel (0) target = $region29
  $region28: #{tictactoe_net_forward.1} parent=0 // pred_region
    _
  $region29: #{tictactoe_net_forward.1} parent=0 // pred_fallthru
    _

</llo_original>
